<compile_context>
chip_gen: v7x
topology: tpu7x:2x2x1
jax: 0.10.0
libtpu: 0.0.40
codegen_flags: <defaults>
</compile_context>

<pallas_src>
import math

import jax
import jax.numpy as jnp
from jax.experimental import pallas as pl
from jax.experimental.pallas import tpu as pltpu


_MASK_NEG = -1e30  # additive mask value; exp(x + _MASK_NEG) == 0.0 in f32


def _make_kernel(time_log, emb_size):
    inv_log_tl = 1.0 / math.log(time_log)
    E = emb_size

    def kernel(emb_ref, t_col_ref, t_row_ref, bias_ref, mask_ref, out_ref):
        emb = emb_ref[...]                        # (TB, S, 4E) packed, lane-dense
        a_src = emb[:, :, 0 * E:1 * E]            # (TB, S, E)
        a_tgt = emb[:, :, 1 * E:2 * E]
        b_src = emb[:, :, 2 * E:3 * E]
        b_tgt = emb[:, :, 3 * E:4 * E]

        # alphas[b, i, j] = <a_src[b, i], a_tgt[b, j]>  (batched MXU contraction)
        alphas = jnp.einsum("bie,bje->bij", a_src, a_tgt,
                            preferred_element_type=jnp.float32)    # (TB, S, S)
        betas = jnp.einsum("bie,bje->bij", b_src, b_tgt,
                           preferred_element_type=jnp.float32)     # (TB, S, S)
        betas = jnp.clip(betas + 1.0, 0.0, 10.0)

        t_col = t_col_ref[...]                    # (TB, S, 1)
        t_row = t_row_ref[...]                    # (TB, 1, S)
        delta_t = jnp.abs(t_col - t_row)                            # (TB, S, S)
        delta_t = jnp.log(delta_t + 1e-10) * inv_log_tl

        # Strict-upper-triangular (i < j) additive mask applied to the exponent
        # before exp: masked entries get exp(-1e30) == 0 exactly, kept entries
        # are bit-identical (add 0.0).
        arg = mask_ref[...] - betas * delta_t                       # (TB, S, S)
        cross = alphas * jnp.exp(arg)
        sum_t = jnp.sum(cross, axis=1, keepdims=True)               # (TB, 1, S)

        out_ref[...] = jax.nn.sigmoid(bias_ref[...] + sum_t)        # (TB, 1, S)

    return kernel


def _gather_features(params, inp):
    skills = inp[:, 0]
    problems = inp[:, 1]
    labels = inp[:, 2]
    times = inp[:, 3].astype(jnp.float32)

    skill_num = params["skill_base"].shape[0]
    mask_labels = labels * (labels < 2).astype(labels.dtype)
    inters = skills + mask_labels * skill_num

    a_src = jnp.take(params["alpha_inter"], inters, axis=0)    # (B, S, E)
    a_tgt = jnp.take(params["alpha_skill"], skills, axis=0)    # (B, S, E)
    b_src = jnp.take(params["beta_inter"], inters, axis=0)     # (B, S, E)
    b_tgt = jnp.take(params["beta_skill"], skills, axis=0)     # (B, S, E)

    problem_bias = jnp.take(params["problem_base"], problems, axis=0)[..., 0]  # (B, S)
    skill_bias = jnp.take(params["skill_base"], skills, axis=0)[..., 0]        # (B, S)
    return a_src, a_tgt, b_src, b_tgt, times, problem_bias + skill_bias


def hawkes_kt_forward(params, inp, time_log, block_b=8):
    a_src, a_tgt, b_src, b_tgt, times, bias = _gather_features(params, inp)
    B, S, E = a_src.shape

    # Pack the four embedding streams into one lane-dense (B, S, 4E) array
    # (4E == 128 lanes when E == 32): one DMA stream instead of four.
    packed = jnp.concatenate([a_src, a_tgt, b_src, b_tgt], axis=-1)

    t_col = times[:, :, None]            # (B, S, 1)
    t_row = times[:, None, :]            # (B, 1, S)
    bias3 = bias[:, None, :]             # (B, 1, S)

    # Batch-block the grid: TB sequences per grid step amortizes the ~0.35us
    # per-step overhead and keeps every DMA slab sublane/lane-dense.
    TB = min(block_b, B)
    n_blocks = pl.cdiv(B, TB)
    Bp = n_blocks * TB
    if Bp != B:
        pad = Bp - B
        packed = jnp.pad(packed, ((0, pad), (0, 0), (0, 0)))
        t_col = jnp.pad(t_col, ((0, pad), (0, 0), (0, 0)))
        t_row = jnp.pad(t_row, ((0, pad), (0, 0), (0, 0)))
        bias3 = jnp.pad(bias3, ((0, pad), (0, 0), (0, 0)))

    # Additive strict-upper-triangular mask (0 where i < j, -1e30 elsewhere),
    # computed once and re-used by every grid step (constant index_map), so no
    # per-step iota/compare work inside the kernel.
    keep = jnp.triu(jnp.ones((S, S), jnp.float32), k=1)
    neg_mask = jnp.where(keep == 1.0, 0.0, _MASK_NEG).astype(jnp.float32)

    kernel = _make_kernel(time_log, E)
    out = pl.pallas_call(
        kernel,
        out_shape=jax.ShapeDtypeStruct((Bp, 1, S), jnp.float32),
        grid_spec=pltpu.PrefetchScalarGridSpec(
            num_scalar_prefetch=0,
            grid=(n_blocks,),
            in_specs=[
                pl.BlockSpec((TB, S, 4 * E), lambda b: (b, 0, 0)),  # packed embeddings
                pl.BlockSpec((TB, S, 1), lambda b: (b, 0, 0)),      # times (column form)
                pl.BlockSpec((TB, 1, S), lambda b: (b, 0, 0)),      # times (row form)
                pl.BlockSpec((TB, 1, S), lambda b: (b, 0, 0)),      # problem+skill bias
                pl.BlockSpec((S, S), lambda b: (0, 0)),             # triangular mask
            ],
            out_specs=pl.BlockSpec((TB, 1, S), lambda b: (b, 0, 0)),
        ),
        compiler_params=pltpu.CompilerParams(
            dimension_semantics=("parallel",)),                     # v7x: 2 TCs
    )(packed, t_col, t_row, bias3, neg_mask)
    return out[:B, 0, :]                 # (B, S)


def hawkes_kt_reference(params, inp, time_log):
    """Pure-JAX reference mirroring the PyTorch forward (float32)."""
    a_src, a_tgt, b_src, b_tgt, times, bias = _gather_features(params, inp)
    alphas = jnp.einsum("bie,bje->bij", a_src, a_tgt)
    betas = jnp.clip(jnp.einsum("bie,bje->bij", b_src, b_tgt) + 1.0, 0.0, 10.0)
    delta_t = jnp.abs(times[:, :, None] - times[:, None, :])
    delta_t = jnp.log(delta_t + 1e-10) / math.log(time_log)
    cross = alphas * jnp.exp(-betas * delta_t)
    S = inp.shape[2]
    keep = jnp.triu(jnp.ones((1, S, S)), k=1) == 1
    cross = jnp.where(keep, cross, 0.0)
    sum_t = cross.sum(axis=-2)
    return jax.nn.sigmoid(bias + sum_t)


def init_params(key, n_problems, n_skills, emb_size):
    ks = jax.random.split(key, 6)
    n = lambda k, shape: (0.01 * jax.random.normal(k, shape)).astype(jnp.float32)
    return {
        "problem_base": n(ks[0], (n_problems, 1)),
        "skill_base":   n(ks[1], (n_skills, 1)),
        "alpha_inter":  n(ks[2], (n_skills * 2, emb_size)),
        "alpha_skill":  n(ks[3], (n_skills, emb_size)),
        "beta_inter":   n(ks[4], (n_skills * 2, emb_size)),
        "beta_skill":   n(ks[5], (n_skills, emb_size)),
    }


if __name__ == "__main__":
    B, S, E = 2, 8, 32
    N_PROBLEMS, N_SKILLS = 50, 10
    TIME_LOG = 5.0

    root = jax.random.PRNGKey(0)
    kp, ks, kpr, kl, kt = jax.random.split(root, 5)

    params = init_params(kp, N_PROBLEMS, N_SKILLS, E)

    skills = jax.random.randint(ks, (B, S), 0, N_SKILLS, dtype=jnp.int32)
    problems = jax.random.randint(kpr, (B, S), 0, N_PROBLEMS, dtype=jnp.int32)
    labels = jax.random.randint(kl, (B, S), 0, 3, dtype=jnp.int32)
    # strictly increasing integer timestamps per sequence
    gaps = jax.random.randint(kt, (B, S), 1, 20, dtype=jnp.int32)
    times = jnp.cumsum(gaps, axis=1)

    inp = jnp.stack([skills, problems, labels, times], axis=1)   # (B, 4, S) int32

    pred = hawkes_kt_forward(params, inp, TIME_LOG)
    pred = jax.block_until_ready(pred)

    ref = hawkes_kt_reference(params, inp, TIME_LOG)
    assert pred.shape == (B, S)
    assert jnp.allclose(pred, ref, rtol=1e-4, atol=2e-5), (pred, ref)

    print("KERNEL_OK")
</pallas_src>

<mosaic_0001>
module attributes {stable_mosaic.version = 11 : i64} {
  func.func @kernel(%arg0: i32, %arg1: memref<2x8x128xf32, #tpu.memory_space<vmem>>, %arg2: memref<2x8x1xf32, #tpu.memory_space<vmem>>, %arg3: memref<2x1x8xf32, #tpu.memory_space<vmem>>, %arg4: memref<2x1x8xf32, #tpu.memory_space<vmem>>, %arg5: memref<8x8xf32, #tpu.memory_space<vmem>>, %arg6: memref<2x1x8xf32, #tpu.memory_space<vmem>>) attributes {dimension_semantics = [#tpu.dimension_semantics<parallel>], iteration_bounds = array<i64: 1>, scalar_prefetch = 0 : i64, scratch_operands = 0 : i64, tpu.core_type = #tpu.core_type<tc>, window_params = [{transform_indices = @transform_0, window_bounds = array<i64: 2, 8, 128>}, {transform_indices = @transform_1, window_bounds = array<i64: 2, 8, 1>}, {transform_indices = @transform_2, window_bounds = array<i64: 2, 1, 8>}, {transform_indices = @transform_3, window_bounds = array<i64: 2, 1, 8>}, {pipeline_mode = #tpu.pipeline_mode<synchronous>, transform_indices = @transform_4, window_bounds = array<i64: 8, 8>}, {transform_indices = @transform_5, window_bounds = array<i64: 2, 1, 8>}]} {
    %c0 = arith.constant 0 : index
    %c0_0 = arith.constant 0 : index
    %c0_1 = arith.constant 0 : index
    %0 = vector.load %arg1[%c0, %c0_0, %c0_1] : memref<2x8x128xf32, #tpu.memory_space<vmem>>, vector<2x8x128xf32>
    %1 = vector.extract_strided_slice %0 {offsets = [0, 0, 0], sizes = [2, 8, 32], strides = [1, 1, 1]} : vector<2x8x128xf32> to vector<2x8x32xf32>
    %2 = vector.extract_strided_slice %0 {offsets = [0, 0, 32], sizes = [2, 8, 32], strides = [1, 1, 1]} : vector<2x8x128xf32> to vector<2x8x32xf32>
    %3 = vector.extract_strided_slice %0 {offsets = [0, 0, 64], sizes = [2, 8, 32], strides = [1, 1, 1]} : vector<2x8x128xf32> to vector<2x8x32xf32>
    %4 = vector.extract_strided_slice %0 {offsets = [0, 0, 96], sizes = [2, 8, 32], strides = [1, 1, 1]} : vector<2x8x128xf32> to vector<2x8x32xf32>
    "tpu.trace_start"() <{level = 10 : i32, message = "bie,bje->bij"}> : () -> ()
    %cst = arith.constant dense<0.000000e+00> : vector<2x8x8xf32>
    %5 = tpu.matmul %1, %2, %cst {dimension_numbers = #tpu.dot_dimension_numbers<[2], [2], [1], [1], [0, 0, 0, 1, 1, 1], [0], [0]>} : vector<2x8x32xf32>, vector<2x8x32xf32>, vector<2x8x8xf32> -> vector<2x8x8xf32>
    %cst_2 = arith.constant dense<0.000000e+00> : vector<2x8x8xf32>
    %6 = tpu.matmul %3, %4, %cst_2 {dimension_numbers = #tpu.dot_dimension_numbers<[2], [2], [1], [1], [0, 0, 0, 1, 1, 1], [0], [0]>} : vector<2x8x32xf32>, vector<2x8x32xf32>, vector<2x8x8xf32> -> vector<2x8x8xf32>
    "tpu.trace_stop"() : () -> ()
    %cst_3 = arith.constant 1.000000e+00 : f32
    %7 = vector.broadcast %cst_3 : f32 to vector<2x8x8xf32>
    %8 = arith.addf %6, %7 : vector<2x8x8xf32>
    %cst_4 = arith.constant 0.000000e+00 : f32
    %cst_5 = arith.constant 1.000000e+01 : f32
    %9 = vector.broadcast %cst_4 : f32 to vector<2x8x8xf32>
    %10 = arith.maximumf %9, %8 : vector<2x8x8xf32>
    %11 = vector.broadcast %cst_5 : f32 to vector<2x8x8xf32>
    %12 = arith.minimumf %11, %10 : vector<2x8x8xf32>
    %c0_6 = arith.constant 0 : index
    %c0_7 = arith.constant 0 : index
    %c0_8 = arith.constant 0 : index
    %13 = vector.load %arg2[%c0_6, %c0_7, %c0_8] : memref<2x8x1xf32, #tpu.memory_space<vmem>>, vector<2x8x1xf32>
    %c0_9 = arith.constant 0 : index
    %c0_10 = arith.constant 0 : index
    %c0_11 = arith.constant 0 : index
    %14 = vector.load %arg3[%c0_9, %c0_10, %c0_11] : memref<2x1x8xf32, #tpu.memory_space<vmem>>, vector<2x1x8xf32>
    %15 = vector.broadcast %13 : vector<2x8x1xf32> to vector<2x8x8xf32>
    %16 = vector.broadcast %14 : vector<2x1x8xf32> to vector<2x8x8xf32>
    %17 = arith.subf %15, %16 : vector<2x8x8xf32>
    %18 = math.absf %17 : vector<2x8x8xf32>
    %cst_12 = arith.constant 1.000000e-10 : f32
    %19 = vector.broadcast %cst_12 : f32 to vector<2x8x8xf32>
    %20 = arith.addf %18, %19 : vector<2x8x8xf32>
    %21 = math.log %20 : vector<2x8x8xf32>
    %cst_13 = arith.constant 0.62133491 : f32
    %22 = vector.broadcast %cst_13 : f32 to vector<2x8x8xf32>
    %23 = arith.mulf %21, %22 : vector<2x8x8xf32>
    %c0_14 = arith.constant 0 : index
    %c0_15 = arith.constant 0 : index
    %24 = vector.load %arg5[%c0_14, %c0_15] : memref<8x8xf32, #tpu.memory_space<vmem>>, vector<8x8xf32>
    %25 = arith.mulf %12, %23 : vector<2x8x8xf32>
    %26 = vector.shape_cast %24 : vector<8x8xf32> to vector<1x8x8xf32>
    %27 = vector.broadcast %26 : vector<1x8x8xf32> to vector<2x8x8xf32>
    %28 = arith.subf %27, %25 : vector<2x8x8xf32>
    %29 = math.exp %28 : vector<2x8x8xf32>
    %30 = arith.mulf %5, %29 : vector<2x8x8xf32>
    %cst_16 = arith.constant dense<0.000000e+00> : vector<2x8xf32>
    %31 = vector.multi_reduction <add>, %30, %cst_16 [1] : vector<2x8x8xf32> to vector<2x8xf32>
    %32 = vector.shape_cast %31 : vector<2x8xf32> to vector<2x1x8xf32>
    %c0_17 = arith.constant 0 : index
    %c0_18 = arith.constant 0 : index
    %c0_19 = arith.constant 0 : index
    %33 = vector.load %arg4[%c0_17, %c0_18, %c0_19] : memref<2x1x8xf32, #tpu.memory_space<vmem>>, vector<2x1x8xf32>
    %34 = arith.addf %33, %32 : vector<2x1x8xf32>
    %35 = arith.negf %34 : vector<2x1x8xf32>
    %36 = math.exp %35 : vector<2x1x8xf32>
    %cst_20 = arith.constant 1.000000e+00 : f32
    %37 = vector.broadcast %cst_20 : f32 to vector<2x1x8xf32>
    %38 = arith.addf %37, %36 : vector<2x1x8xf32>
    %39 = arith.divf %37, %38 : vector<2x1x8xf32>
    %c0_21 = arith.constant 0 : index
    %c0_22 = arith.constant 0 : index
    %c0_23 = arith.constant 0 : index
    %40 = vector.load %arg6[%c0_21, %c0_22, %c0_23] : memref<2x1x8xf32, #tpu.memory_space<vmem>>, vector<2x1x8xf32>
    tpu.vector_store %arg6[%c0_21, %c0_22, %c0_23], %39 {strides = array<i32>} : memref<2x1x8xf32, #tpu.memory_space<vmem>>, vector<2x1x8xf32>,
    return
  }
  func.func @transform_0(%arg0: i32) -> (i32, i32, i32) {
    %c0_i32 = arith.constant 0 : i32
    %c0_i32_0 = arith.constant 0 : i32
    %c0_i32_1 = arith.constant 0 : i32
    return %arg0, %c0_i32, %c0_i32_0 : i32, i32, i32
  }
  func.func @transform_1(%arg0: i32) -> (i32, i32, i32) {
    %c0_i32 = arith.constant 0 : i32
    %c0_i32_0 = arith.constant 0 : i32
    %c0_i32_1 = arith.constant 0 : i32
    return %arg0, %c0_i32, %c0_i32_0 : i32, i32, i32
  }
  func.func @transform_2(%arg0: i32) -> (i32, i32, i32) {
    %c0_i32 = arith.constant 0 : i32
    %c0_i32_0 = arith.constant 0 : i32
    %c0_i32_1 = arith.constant 0 : i32
    return %arg0, %c0_i32, %c0_i32_0 : i32, i32, i32
  }
  func.func @transform_3(%arg0: i32) -> (i32, i32, i32) {
    %c0_i32 = arith.constant 0 : i32
    %c0_i32_0 = arith.constant 0 : i32
    %c0_i32_1 = arith.constant 0 : i32
    return %arg0, %c0_i32, %c0_i32_0 : i32, i32, i32
  }
  func.func @transform_4(%arg0: i32) -> (i32, i32) {
    %c0_i32 = arith.constant 0 : i32
    %c0_i32_0 = arith.constant 0 : i32
    %c0_i32_1 = arith.constant 0 : i32
    return %c0_i32, %c0_i32_0 : i32, i32
  }
  func.func @transform_5(%arg0: i32) -> (i32, i32, i32) {
    %c0_i32 = arith.constant 0 : i32
    %c0_i32_0 = arith.constant 0 : i32
    %c0_i32_1 = arith.constant 0 : i32
    return %arg0, %c0_i32, %c0_i32_0 : i32, i32, i32
  }
}

</mosaic_0001>

<llo_original>
// kernel: tpu_custom_call.1
$region0: #{tpu_custom_call.1}
  #allocation0 [shape = 'u32[]', space=smem, size = 0x4, offset = 0x4, fixed_abs, tag = 'smem constant byte address 0x4 - core index']
  #allocation1 [shape = 'u32[144,128]{1,0:T(1,128)}', space=vmem, size = 0x12000, scoped, tag = 'internal scratch']
  %s0 = inlined_call_operand.vmem [shape: f32[2,8,128], index: 0, kind: input, shape index: {}]
  %s1 = inlined_call_operand.vmem [shape: f32[2,8,1], index: 1, kind: input, shape index: {}]
  %s2 = inlined_call_operand.hbm [shape: f32[2,1,8], index: 2, kind: input, shape index: {}]
  %s3 = inlined_call_operand.vmem [shape: f32[2,1,8], index: 3, kind: input, shape index: {}]
  %s4 = inlined_call_operand.vmem [shape: f32[8,8], index: 4, kind: input, shape index: {}]
  %s5 = inlined_call_operand.hbm [shape: f32[2,1,8], index: 5, kind: output, shape index: {}]
  %s6 = sld [smem:[#allocation0]]
  $region34: #{tpu_custom_call.1} parent=0
    _
  %s8 = ssub.s32 1, %s6
  %s9 = scalar_select 0, %s8, %s6
  $region1: #{tpu_custom_call.1} parent=0
    #allocation2 [shape = 'u8[1024]{0}', space=vmem, size = 0x400, scoped, tag = 'input window, operand 2, single buffered']
    #allocation3 [shape = 's32[1]{0}', space=sflag, size = 0x4, scoped, tag = 'scoped memory for tpu_custom_call.1']
    #allocation4 [shape = 's32[1]{0}', space=sflag, size = 0x4, scoped, tag = 'scoped memory for tpu_custom_call.1']
    #allocation5 [shape = 'u8[1024]{0}', space=vmem, size = 0x400, scoped, tag = 'output window, operand 0, single buffered']
    %10 = vsyncpa [#allocation3], 0
    %11 = vsyncpa [#allocation4], 0
    // Predicated region
    $region2: #{tpu_custom_call.1} parent=1 // pred_check
      _
    $region3: #{tpu_custom_call.1} parent=1 // pred_check_branch
      %13 = sbr.rel (0) target = $region5
    $region4: #{tpu_custom_call.1} parent=1 // pred_region
      _
    $region5: #{tpu_custom_call.1} parent=1 // pred_fallthru
      _
    // Predicated region
    $region6: #{tpu_custom_call.1} parent=1 // pred_check
      _
    $region7: #{tpu_custom_call.1} parent=1 // pred_check_branch
      %15 = sbr.rel (0) target = $region9
    $region8: #{tpu_custom_call.1} parent=1 // pred_region
      _
    $region9: #{tpu_custom_call.1} parent=1 // pred_fallthru
      _
    // Predicated region
    $region10: #{tpu_custom_call.1} parent=1 // pred_check
      _
    $region11: #{tpu_custom_call.1} parent=1 // pred_check_branch
      %17 = sbr.rel (0) target = $region13
    $region12: #{tpu_custom_call.1} parent=1 // pred_region
      %s19 = ssub.s32 32, 32
      %20 = vsyncadd [#allocation3], %s19
      %s21 = sshll.u32 [#allocation2], 4
      %s22 = int_to_ptr.vmem [resolvable:$true] %s21
      %27 = dma.hbm_to_vmem [thread:$0]  %s2, 32, %s22, [#allocation3], 16, 16, 1
    $region13: #{tpu_custom_call.1} parent=1 // pred_fallthru
      _
    // Predicated region
    $region14: #{tpu_custom_call.1} parent=1 // pred_check
      _
    $region15: #{tpu_custom_call.1} parent=1 // pred_check_branch
      %29 = sbr.rel (0) target = $region17
    $region16: #{tpu_custom_call.1} parent=1 // pred_region
      _
    $region17: #{tpu_custom_call.1} parent=1 // pred_fallthru
      _
    // Predicated region
    $region18: #{tpu_custom_call.1} parent=1 // pred_check
      _
    $region19: #{tpu_custom_call.1} parent=1 // pred_check_branch
      %31 = sbr.rel (0) target = $region21
    $region20: #{tpu_custom_call.1} parent=1 // pred_region
      _
    $region21: #{tpu_custom_call.1} parent=1 // pred_fallthru
      _
    // Predicated region
    $region22: #{tpu_custom_call.1} parent=1 // pred_check
      _
    $region23: #{tpu_custom_call.1} parent=1 // pred_check_branch
      %33 = sbr.rel (0) target = $region25
    $region24: #{tpu_custom_call.1} parent=1 // pred_region
      %34 = dma.done [#allocation3], 32
    $region25: #{tpu_custom_call.1} parent=1 // pred_fallthru
      _
    %v35 = vld [vmem:[%s0] sm:$0xff]
    %v36 = vld [vmem:[%s0 + $0x8] sm:$0xff]
    %38 = vrot.lane.b32.xlu0 %v35, 96
    %v39 = vpop.permute.xlu0 %38
    %vm40 = vcmask 261120
    %v41 = vsel %vm40, %v35, 0
    %v43 = vsel %vm40, %v39, 0
    %45 = vmatprep.subr.mxu0 0.0
    %46 = vmatpush1.xpose.msra.mxu0 %v43
    %47 = vmatprep.subr.mxu0 0.0
    %48 = vmatpush1.xpose.msra.mxu0 0.0
    %49 = vmatprep.subr.mxu0 0.0
    %50 = vmatpush1.xpose.msra.mxu0 0.0
    %51 = vmatprep.subr.mxu0 0.0
    %52 = vmatpush1.xpose.msra.mxu0 0.0
    %53 = vmatprep.subr.mxu0 0.0
    %54 = vmatpush1.xpose.msra.mxu0 0.0
    %55 = vmatprep.subr.mxu0 0.0
    %56 = vmatpush1.xpose.msra.mxu0 0.0
    %57 = vmatprep.subr.mxu0 0.0
    %58 = vmatpush1.xpose.msra.mxu0 0.0
    %59 = vmatprep.subr.mxu0 0.0
    %60 = vmatpush1.xpose.msra.mxu0 0.0
    %61 = vmatprep.subr.mxu0 0.0
    %62 = vmatpush1.xpose.msra.mxu0 0.0
    %63 = vmatprep.subr.mxu0 0.0
    %64 = vmatpush1.xpose.msra.mxu0 0.0
    %65 = vmatprep.subr.mxu0 0.0
    %66 = vmatpush1.xpose.msra.mxu0 0.0
    %67 = vmatprep.subr.mxu0 0.0
    %68 = vmatpush1.xpose.msra.mxu0 0.0
    %69 = vmatprep.subr.mxu0 0.0
    %70 = vmatpush1.xpose.msra.mxu0 0.0
    %71 = vmatprep.subr.mxu0 0.0
    %72 = vmatpush1.xpose.msra.mxu0 0.0
    %73 = vmatprep.subr.mxu0 0.0
    %74 = vmatpush1.xpose.msra.mxu0 0.0
    %75 = vmatprep.subr.mxu0 0.0
    %76 = vmatpush1.xpose.msra.mxu0 0.0
    %77 = vmatprep.subr.mxu0 0.0
    %78 = vmatpush1.xpose.msra.mxu0 0.0
    %79 = vmatprep.subr.mxu0 0.0
    %80 = vmatpush1.xpose.msra.mxu0 0.0
    %81 = vmatprep.subr.mxu0 0.0
    %82 = vmatpush1.xpose.msra.mxu0 0.0
    %83 = vmatprep.subr.mxu0 0.0
    %84 = vmatpush1.xpose.msra.mxu0 0.0
    %85 = vmatprep.subr.mxu0 0.0
    %86 = vmatpush1.xpose.msra.mxu0 0.0
    %87 = vmatprep.subr.mxu0 0.0
    %88 = vmatpush1.xpose.msra.mxu0 0.0
    %89 = vmatprep.subr.mxu0 0.0
    %90 = vmatpush1.xpose.msra.mxu0 0.0
    %91 = vmatprep.subr.mxu0 0.0
    %92 = vmatpush1.xpose.msra.mxu0 0.0
    %93 = vmatprep.subr.mxu0 0.0
    %94 = vmatpush1.xpose.msra.mxu0 0.0
    %95 = vmatprep.subr.mxu0 0.0
    %96 = vmatpush1.xpose.msra.mxu0 0.0
    %97 = vmatprep.subr.mxu0 0.0
    %98 = vmatpush1.xpose.msra.mxu0 0.0
    %99 = vmatprep.subr.mxu0 0.0
    %100 = vmatpush1.xpose.msra.mxu0 0.0
    %101 = vmatprep.subr.mxu0 0.0
    %102 = vmatpush1.xpose.msra.mxu0 0.0
    %103 = vmatprep.subr.mxu0 0.0
    %104 = vmatpush1.xpose.msra.mxu0 0.0
    %105 = vmatprep.subr.mxu0 0.0
    %106 = vmatpush1.xpose.msra.mxu0 0.0
    %107 = vmatprep.subr.mxu0 0.0
    %108 = vmatpush1.xpose.msra.mxu0 0.0
    %109 = vmatprep.mubr.f32.mxu0 0.0
    %110 = vmatmul.mubr.f32.gmra.mrb[0].mxu0 %v41
    %v111 = vpop.f32.mrb[0].mxu0
    %v112 = vadd.f32 0.0, %v111
    %v113 = vpop.f32.mrb[0].mxu0
    %114 = vdwg.mxu0
    %116 = vrot.lane.b32.xlu0 %v36, 96
    %v117 = vpop.permute.xlu0 %116
    %v118 = vsel %vm40, %v36, 0
    %v120 = vsel %vm40, %v117, 0
    %122 = vmatprep.subr.mxu0 0.0
    %123 = vmatpush1.xpose.msra.mxu0 %v120
    %124 = vmatprep.subr.mxu0 0.0
    %125 = vmatpush1.xpose.msra.mxu0 0.0
    %126 = vmatprep.subr.mxu0 0.0
    %127 = vmatpush1.xpose.msra.mxu0 0.0
    %128 = vmatprep.subr.mxu0 0.0
    %129 = vmatpush1.xpose.msra.mxu0 0.0
    %130 = vmatprep.subr.mxu0 0.0
    %131 = vmatpush1.xpose.msra.mxu0 0.0
    %132 = vmatprep.subr.mxu0 0.0
    %133 = vmatpush1.xpose.msra.mxu0 0.0
    %134 = vmatprep.subr.mxu0 0.0
    %135 = vmatpush1.xpose.msra.mxu0 0.0
    %136 = vmatprep.subr.mxu0 0.0
    %137 = vmatpush1.xpose.msra.mxu0 0.0
    %138 = vmatprep.subr.mxu0 0.0
    %139 = vmatpush1.xpose.msra.mxu0 0.0
    %140 = vmatprep.subr.mxu0 0.0
    %141 = vmatpush1.xpose.msra.mxu0 0.0
    %142 = vmatprep.subr.mxu0 0.0
    %143 = vmatpush1.xpose.msra.mxu0 0.0
    %144 = vmatprep.subr.mxu0 0.0
    %145 = vmatpush1.xpose.msra.mxu0 0.0
    %146 = vmatprep.subr.mxu0 0.0
    %147 = vmatpush1.xpose.msra.mxu0 0.0
    %148 = vmatprep.subr.mxu0 0.0
    %149 = vmatpush1.xpose.msra.mxu0 0.0
    %150 = vmatprep.subr.mxu0 0.0
    %151 = vmatpush1.xpose.msra.mxu0 0.0
    %152 = vmatprep.subr.mxu0 0.0
    %153 = vmatpush1.xpose.msra.mxu0 0.0
    %154 = vmatprep.subr.mxu0 0.0
    %155 = vmatpush1.xpose.msra.mxu0 0.0
    %156 = vmatprep.subr.mxu0 0.0
    %157 = vmatpush1.xpose.msra.mxu0 0.0
    %158 = vmatprep.subr.mxu0 0.0
    %159 = vmatpush1.xpose.msra.mxu0 0.0
    %160 = vmatprep.subr.mxu0 0.0
    %161 = vmatpush1.xpose.msra.mxu0 0.0
    %162 = vmatprep.subr.mxu0 0.0
    %163 = vmatpush1.xpose.msra.mxu0 0.0
    %164 = vmatprep.subr.mxu0 0.0
    %165 = vmatpush1.xpose.msra.mxu0 0.0
    %166 = vmatprep.subr.mxu0 0.0
    %167 = vmatpush1.xpose.msra.mxu0 0.0
    %168 = vmatprep.subr.mxu0 0.0
    %169 = vmatpush1.xpose.msra.mxu0 0.0
    %170 = vmatprep.subr.mxu0 0.0
    %171 = vmatpush1.xpose.msra.mxu0 0.0
    %172 = vmatprep.subr.mxu0 0.0
    %173 = vmatpush1.xpose.msra.mxu0 0.0
    %174 = vmatprep.subr.mxu0 0.0
    %175 = vmatpush1.xpose.msra.mxu0 0.0
    %176 = vmatprep.subr.mxu0 0.0
    %177 = vmatpush1.xpose.msra.mxu0 0.0
    %178 = vmatprep.subr.mxu0 0.0
    %179 = vmatpush1.xpose.msra.mxu0 0.0
    %180 = vmatprep.subr.mxu0 0.0
    %181 = vmatpush1.xpose.msra.mxu0 0.0
    %182 = vmatprep.subr.mxu0 0.0
    %183 = vmatpush1.xpose.msra.mxu0 0.0
    %184 = vmatprep.subr.mxu0 0.0
    %185 = vmatpush1.xpose.msra.mxu0 0.0
    %186 = vmatprep.mubr.f32.mxu0 0.0
    %187 = vmatmul.mubr.f32.gmra.mrb[0].mxu0 %v118
    %v188 = vpop.f32.mrb[0].mxu0
    %v189 = vadd.f32 0.0, %v188
    %v190 = vpop.f32.mrb[0].mxu0
    %191 = vdwg.mxu0
    %192 = vrot.lane.b32.xlu0 %v35, 64
    %v193 = vpop.permute.xlu0 %192
    %194 = vrot.lane.b32.xlu0 %v35, 32
    %v195 = vpop.permute.xlu0 %194
    %v196 = vsel %vm40, %v193, 0
    %v198 = vsel %vm40, %v195, 0
    %200 = vmatprep.subr.mxu0 0.0
    %201 = vmatpush1.xpose.msra.mxu0 %v198
    %202 = vmatprep.subr.mxu0 0.0
    %203 = vmatpush1.xpose.msra.mxu0 0.0
    %204 = vmatprep.subr.mxu0 0.0
    %205 = vmatpush1.xpose.msra.mxu0 0.0
    %206 = vmatprep.subr.mxu0 0.0
    %207 = vmatpush1.xpose.msra.mxu0 0.0
    %208 = vmatprep.subr.mxu0 0.0
    %209 = vmatpush1.xpose.msra.mxu0 0.0
    %210 = vmatprep.subr.mxu0 0.0
    %211 = vmatpush1.xpose.msra.mxu0 0.0
    %212 = vmatprep.subr.mxu0 0.0
    %213 = vmatpush1.xpose.msra.mxu0 0.0
    %214 = vmatprep.subr.mxu0 0.0
    %215 = vmatpush1.xpose.msra.mxu0 0.0
    %216 = vmatprep.subr.mxu0 0.0
    %217 = vmatpush1.xpose.msra.mxu0 0.0
    %218 = vmatprep.subr.mxu0 0.0
    %219 = vmatpush1.xpose.msra.mxu0 0.0
    %220 = vmatprep.subr.mxu0 0.0
    %221 = vmatpush1.xpose.msra.mxu0 0.0
    %222 = vmatprep.subr.mxu0 0.0
    %223 = vmatpush1.xpose.msra.mxu0 0.0
    %224 = vmatprep.subr.mxu0 0.0
    %225 = vmatpush1.xpose.msra.mxu0 0.0
    %226 = vmatprep.subr.mxu0 0.0
    %227 = vmatpush1.xpose.msra.mxu0 0.0
    %228 = vmatprep.subr.mxu0 0.0
    %229 = vmatpush1.xpose.msra.mxu0 0.0
    %230 = vmatprep.subr.mxu0 0.0
    %231 = vmatpush1.xpose.msra.mxu0 0.0
    %232 = vmatprep.subr.mxu0 0.0
    %233 = vmatpush1.xpose.msra.mxu0 0.0
    %234 = vmatprep.subr.mxu0 0.0
    %235 = vmatpush1.xpose.msra.mxu0 0.0
    %236 = vmatprep.subr.mxu0 0.0
    %237 = vmatpush1.xpose.msra.mxu0 0.0
    %238 = vmatprep.subr.mxu0 0.0
    %239 = vmatpush1.xpose.msra.mxu0 0.0
    %240 = vmatprep.subr.mxu0 0.0
    %241 = vmatpush1.xpose.msra.mxu0 0.0
    %242 = vmatprep.subr.mxu0 0.0
    %243 = vmatpush1.xpose.msra.mxu0 0.0
    %244 = vmatprep.subr.mxu0 0.0
    %245 = vmatpush1.xpose.msra.mxu0 0.0
    %246 = vmatprep.subr.mxu0 0.0
    %247 = vmatpush1.xpose.msra.mxu0 0.0
    %248 = vmatprep.subr.mxu0 0.0
    %249 = vmatpush1.xpose.msra.mxu0 0.0
    %250 = vmatprep.subr.mxu0 0.0
    %251 = vmatpush1.xpose.msra.mxu0 0.0
    %252 = vmatprep.subr.mxu0 0.0
    %253 = vmatpush1.xpose.msra.mxu0 0.0
    %254 = vmatprep.subr.mxu0 0.0
    %255 = vmatpush1.xpose.msra.mxu0 0.0
    %256 = vmatprep.subr.mxu0 0.0
    %257 = vmatpush1.xpose.msra.mxu0 0.0
    %258 = vmatprep.subr.mxu0 0.0
    %259 = vmatpush1.xpose.msra.mxu0 0.0
    %260 = vmatprep.subr.mxu0 0.0
    %261 = vmatpush1.xpose.msra.mxu0 0.0
    %262 = vmatprep.subr.mxu0 0.0
    %263 = vmatpush1.xpose.msra.mxu0 0.0
    %264 = vmatprep.mubr.f32.mxu0 0.0
    %265 = vmatmul.mubr.f32.gmra.mrb[0].mxu0 %v196
    %v266 = vpop.f32.mrb[0].mxu0
    %v267 = vadd.f32 1.0, %v266
    %v268 = vpop.f32.mrb[0].mxu0
    %269 = vdwg.mxu0
    %270 = vrot.lane.b32.xlu0 %v36, 64
    %v271 = vpop.permute.xlu0 %270
    %272 = vrot.lane.b32.xlu0 %v36, 32
    %v273 = vpop.permute.xlu0 %272
    %v274 = vsel %vm40, %v271, 0
    %v276 = vsel %vm40, %v273, 0
    %278 = vmatprep.subr.mxu0 0.0
    %279 = vmatpush1.xpose.msra.mxu0 %v276
    %280 = vmatprep.subr.mxu0 0.0
    %281 = vmatpush1.xpose.msra.mxu0 0.0
    %282 = vmatprep.subr.mxu0 0.0
    %283 = vmatpush1.xpose.msra.mxu0 0.0
    %284 = vmatprep.subr.mxu0 0.0
    %285 = vmatpush1.xpose.msra.mxu0 0.0
    %286 = vmatprep.subr.mxu0 0.0
    %287 = vmatpush1.xpose.msra.mxu0 0.0
    %288 = vmatprep.subr.mxu0 0.0
    %289 = vmatpush1.xpose.msra.mxu0 0.0
    %290 = vmatprep.subr.mxu0 0.0
    %291 = vmatpush1.xpose.msra.mxu0 0.0
    %292 = vmatprep.subr.mxu0 0.0
    %293 = vmatpush1.xpose.msra.mxu0 0.0
    %294 = vmatprep.subr.mxu0 0.0
    %295 = vmatpush1.xpose.msra.mxu0 0.0
    %296 = vmatprep.subr.mxu0 0.0
    %297 = vmatpush1.xpose.msra.mxu0 0.0
    %298 = vmatprep.subr.mxu0 0.0
    %299 = vmatpush1.xpose.msra.mxu0 0.0
    %300 = vmatprep.subr.mxu0 0.0
    %301 = vmatpush1.xpose.msra.mxu0 0.0
    %302 = vmatprep.subr.mxu0 0.0
    %303 = vmatpush1.xpose.msra.mxu0 0.0
    %304 = vmatprep.subr.mxu0 0.0
    %305 = vmatpush1.xpose.msra.mxu0 0.0
    %306 = vmatprep.subr.mxu0 0.0
    %307 = vmatpush1.xpose.msra.mxu0 0.0
    %308 = vmatprep.subr.mxu0 0.0
    %309 = vmatpush1.xpose.msra.mxu0 0.0
    %310 = vmatprep.subr.mxu0 0.0
    %311 = vmatpush1.xpose.msra.mxu0 0.0
    %312 = vmatprep.subr.mxu0 0.0
    %313 = vmatpush1.xpose.msra.mxu0 0.0
    %314 = vmatprep.subr.mxu0 0.0
    %315 = vmatpush1.xpose.msra.mxu0 0.0
    %316 = vmatprep.subr.mxu0 0.0
    %317 = vmatpush1.xpose.msra.mxu0 0.0
    %318 = vmatprep.subr.mxu0 0.0
    %319 = vmatpush1.xpose.msra.mxu0 0.0
    %320 = vmatprep.subr.mxu0 0.0
    %321 = vmatpush1.xpose.msra.mxu0 0.0
    %322 = vmatprep.subr.mxu0 0.0
    %323 = vmatpush1.xpose.msra.mxu0 0.0
    %324 = vmatprep.subr.mxu0 0.0
    %325 = vmatpush1.xpose.msra.mxu0 0.0
    %326 = vmatprep.subr.mxu0 0.0
    %327 = vmatpush1.xpose.msra.mxu0 0.0
    %328 = vmatprep.subr.mxu0 0.0
    %329 = vmatpush1.xpose.msra.mxu0 0.0
    %330 = vmatprep.subr.mxu0 0.0
    %331 = vmatpush1.xpose.msra.mxu0 0.0
    %332 = vmatprep.subr.mxu0 0.0
    %333 = vmatpush1.xpose.msra.mxu0 0.0
    %334 = vmatprep.subr.mxu0 0.0
    %335 = vmatpush1.xpose.msra.mxu0 0.0
    %336 = vmatprep.subr.mxu0 0.0
    %337 = vmatpush1.xpose.msra.mxu0 0.0
    %338 = vmatprep.subr.mxu0 0.0
    %339 = vmatpush1.xpose.msra.mxu0 0.0
    %340 = vmatprep.subr.mxu0 0.0
    %341 = vmatpush1.xpose.msra.mxu0 0.0
    %342 = vmatprep.mubr.f32.mxu0 0.0
    %343 = vmatmul.mubr.f32.gmra.mrb[0].mxu0 %v274
    %v344 = vpop.f32.mrb[0].mxu0
    %v345 = vadd.f32 1.0, %v344
    %v346 = vpop.f32.mrb[0].mxu0
    %347 = vdwg.mxu0
    %v348 = vmax.f32 %v267, 0.0
    %v349 = vmax.f32 %v345, 0.0
    %v350 = vmin.f32 %v348, 10.0
    %v351 = vmin.f32 %v349, 10.0
    %v352 = vld [vmem:[%s1] sm:$0xff]
    %v353 = vld [vmem:[%s1 + $0x8] sm:$0xff]
    %v354 = vld [vmem:[#allocation2] sm:$0x1]
    %v355 = vld [vmem:[#allocation2 + $0x1] sm:$0x1]
    %357 = vset.pattern.permute.xlu0 0
    %358 = vperm.xlu0 %357, %v352
    %v359 = vpop.permute.xlu0 %358
    %362 = vset.pattern.permute.xlu0 0
    %363 = vperm.xlu0 %362, %v353
    %v364 = vpop.permute.xlu0 %363
    %v368 = vlaneseq
    %v369 = vshrl.u32 %v368, 7
    %v370 = vsub.s32 0, %v369
    %v371 = vrot.slane %v354, %v370
    %v372 = vlaneseq
    %v373 = vshrl.u32 %v372, 7
    %v374 = vsub.s32 0, %v373
    %v375 = vrot.slane %v355, %v374
    %v378 = vsub.f32 %v359, %v371
    %v379 = vsub.f32 %v364, %v375
    %v380 = vand.u32 2147483647, %v378
    %v381 = vand.u32 2147483647, %v379
    %v382 = vadd.f32 %v380, 1e-10
    %v383 = vadd.f32 %v381, 1e-10
    %v384 = vlog2.pop %v382
    %v385 = vmul.f32 %v384, 0.6931472
    %v386 = vlog2.pop %v383
    %v387 = vmul.f32 %v386, 0.6931472
    %v388 = vmul.f32 %v385, 0.6213349
    %v389 = vmul.f32 %v387, 0.6213349
    %v390 = vld [vmem:[%s4] sm:$0xff]
    %v391 = vmul.f32 %v350, %v388
    %v392 = vmul.f32 %v351, %v389
    %v393 = vsub.f32 %v390, %v391
    %v394 = vsub.f32 %v390, %v392
    %v395 = vmul.f32 %v393, 1.442695
    %v396 = vpow.pop %v395
    %v397 = vmul.f32 %v394, 1.442695
    %v398 = vpow.pop %v397
    %v399 = vmul.f32 %v112, %v396
    %v400 = vmul.f32 %v189, %v398
    %vm401 = vcmask 64512
    %v402 = vsel %vm401, %v399, 0.0
    %v403 = vrot.slane %v402, 4
    %v404 = vadd.f32 %v402, %v403
    %v405 = vrot.slane %v404, 2
    %v406 = vadd.f32 %v404, %v405
    %v407 = vrot.slane %v406, 1
    %v408 = vadd.f32 %v406, %v407
    %v409 = vsel %vm401, %v400, 0.0
    %v410 = vrot.slane %v409, 4
    %v411 = vadd.f32 %v409, %v410
    %v412 = vrot.slane %v411, 2
    %v413 = vadd.f32 %v411, %v412
    %v414 = vrot.slane %v413, 1
    %v415 = vadd.f32 %v413, %v414
    %v416 = vld [vmem:[%s3] sm:$0x1]
    %v417 = vld [vmem:[%s3 + $0x1] sm:$0x1]
    %v418 = vadd.f32 %v416, %v408
    %v419 = vadd.f32 %v417, %v415
    %v420 = vxor.u32 %v418, 2147483648
    %v421 = vxor.u32 %v419, 2147483648
    %v422 = vmul.f32 %v420, 1.442695
    %v423 = vpow.pop %v422
    %v424 = vmul.f32 %v421, 1.442695
    %v425 = vpow.pop %v424
    %v426 = vadd.f32 %v423, 1.0
    %v427 = vadd.f32 %v425, 1.0
    %v428 = vrcp.pop %v426
    %v429 = vmul.f32 1.0, %v428
    %v430 = vrcp.pop %v427
    %v431 = vmul.f32 1.0, %v430
    %vm432 = vcmask 57344
    %433 = vst.msk [vmem:[#allocation5] sm:$0x1] %vm432, %v429
    %434 = vst.msk [vmem:[#allocation5 + $0x1] sm:$0x1] %vm432, %v431
    // Predicated region
    $region26: #{tpu_custom_call.1} parent=1 // pred_check
      _
    $region27: #{tpu_custom_call.1} parent=1 // pred_check_branch
      %436 = sbr.rel (0) target = $region29
    $region28: #{tpu_custom_call.1} parent=1 // pred_region
      %s438 = ssub.s32 32, 32
      %439 = vsyncadd [#allocation4], %s438
      %s440 = sshll.u32 [#allocation5], 4
      %s441 = int_to_ptr.vmem [resolvable:$true] %s440
      %446 = dma.vmem_to_hbm [thread:$0]  %s441, 32, %s5, [#allocation4], 16, 16, 1
    $region29: #{tpu_custom_call.1} parent=1 // pred_fallthru
      _
    // Predicated region
    $region30: #{tpu_custom_call.1} parent=1 // pred_check
      _
    $region31: #{tpu_custom_call.1} parent=1 // pred_check_branch
      %448 = sbr.rel (0) target = $region33
    $region32: #{tpu_custom_call.1} parent=1 // pred_region
      %449 = dma.done [#allocation4], 32
    $region33: #{tpu_custom_call.1} parent=1 // pred_fallthru
      _
    %450 = vsyncpa [#allocation3], 1
    %451 = vsyncpa [#allocation4], 1

</llo_original>
